<compile_context>
chip_gen: v7x
topology: tpu7x:2x2x1
jax: 0.10.0
libtpu: 0.0.40
codegen_flags: <defaults>
</compile_context>

<pallas_src>
import functools
import math

import jax
import jax.numpy as jnp
from jax.experimental import pallas as pl
from jax.experimental.pallas import tpu as pltpu

DECODER_PATCH_SIZE = 4  # "decoder_patch_size" attribute the base class assumes


def _round_up(x, m):
    return ((x + m - 1) // m) * m


# ----------------------------- JAX glue --------------------------------- #

def patchify(imgs, p):
    """imgs: (N, 3, H, W) -> (N, L, p*p*3), matching torch.einsum('nchpwq->nhwpqc')."""
    N, C, H, W = imgs.shape
    assert H == W and H % p == 0
    h = w = H // p
    x = imgs.reshape(N, C, h, p, w, p)
    x = jnp.einsum("nchpwq->nhwpqc", x)
    return x.reshape(N, h * w, p * p * C)


def masking_id(key, batch_size, num_patches, mask_ratio):
    """Same semantics as MaskedAutoencoder.masking_id (deterministic via PRNGKey)."""
    N, L = batch_size, num_patches
    len_keep = int(L * (1 - mask_ratio))
    noise = jax.random.uniform(key, (N, L))
    ids_shuffle = jnp.argsort(noise, axis=1)
    ids_restore = jnp.argsort(ids_shuffle, axis=1)
    ids_keep = ids_shuffle[:, :len_keep]
    mask = jnp.ones((N, L), jnp.float32)
    mask = mask.at[:, :len_keep].set(0.0)
    mask = jnp.take_along_axis(mask, ids_restore, axis=1)
    return ids_keep, ids_restore, mask


def random_masking(x, ids_keep):
    """Gather kept patches: x (N, L, D), ids_keep (N, K) -> (N, K, D)."""
    return jnp.take_along_axis(x, ids_keep[:, :, None], axis=1)


# --------------------------- Pallas kernel ------------------------------ #

def _masked_loss_kernel(t_ref, p_ref, m_ref, out_ref, *,
                        patch_dim, pack, tile_r, total_rows, mask_tail):
    """One grid step over a lane-dense tile of packed patches.

    t, p : (tile_r, ROW_W)   pack patches per packed row, ROW_W = pack * patch_dim
    m    : (tile_r, pack)    per-patch mask (1 = removed/predicted, 0 = kept)
    out  : (1, 8, 128)       this tile's masked loss-sum, scalar broadcast
    """
    f32 = jnp.float32
    row_w = pack * patch_dim

    t = t_ref[...].astype(f32)
    p = p_ref[...].astype(f32)
    m = m_ref[...].astype(f32)

    if mask_tail:
        # Partial last tile: rows past `total_rows` are garbage (no wrapper pad
        # anymore).  Select-zero them BEFORE any arithmetic so Inf/NaN garbage
        # cannot leak into the reduction (where-select, not multiply-by-zero).
        row0 = pl.program_id(0) * tile_r
        ridx = jax.lax.broadcasted_iota(jnp.int32, (tile_r, 1), 0) + row0
        valid = ridx < total_rows
        zero = jnp.zeros((), f32)
        t = jnp.where(valid, t, zero)
        p = jnp.where(valid, p, zero)
        m = jnp.where(valid, m, zero)

    # Static 0/1 block-diagonal selector generated in-kernel (iota + compare,
    # ~3 vregs of work) instead of two resident DMA-fed inputs:
    #   sel[k, j]  = 1 iff lane k belongs to patch j            (row_w, pack)
    #   selT[j, k] = sel[k, j]                                   (pack, row_w)
    r = jax.lax.broadcasted_iota(jnp.int32, (row_w, pack), 0)
    c = jax.lax.broadcasted_iota(jnp.int32, (row_w, pack), 1)
    sel = ((r >= c * patch_dim) & (r < (c + 1) * patch_dim)).astype(f32)
    rt = jax.lax.broadcasted_iota(jnp.int32, (pack, row_w), 1)
    ct = jax.lax.broadcasted_iota(jnp.int32, (pack, row_w), 0)
    selT = ((rt >= ct * patch_dim) & (rt < (ct + 1) * patch_dim)).astype(f32)

    inv_d = 1.0 / patch_dim
    inv_dm1 = 1.0 / (patch_dim - 1)

    # Per-patch segment sums on the (otherwise idle) MXU; VPU stays elementwise.
    # TODO(synk): on v7x (HBM ~3.2 TB/s) a bundle dump may show these dots on
    # the critical path; if so, cast sel/selT (exact in 0/1) and the operands to
    # bf16 to avoid multi-pass f32 MXU lowering.
    sum_t = jnp.dot(t, sel, preferred_element_type=f32)              # (tile_r, pack)
    mean = sum_t * inv_d
    mean_b = jnp.dot(mean, selT, preferred_element_type=f32)         # (tile_r, row_w)
    centered = t - mean_b
    ssq = jnp.dot(centered * centered, sel, preferred_element_type=f32)
    var = ssq * inv_dm1                  # unbiased (matches torch.var default)
    inv_std = jax.lax.rsqrt(var + 1e-6)
    inv_b = jnp.dot(inv_std, selT, preferred_element_type=f32)       # (tile_r, row_w)
    diff = p - centered * inv_b
    per_patch = jnp.dot(diff * diff, sel, preferred_element_type=f32) * inv_d
    tile_sum = jnp.sum(per_patch * m)    # masked loss sum for this tile
    out_ref[...] = jnp.broadcast_to(tile_sum, out_ref.shape).astype(f32)


def forward_loss(imgs, pred, mask, p=DECODER_PATCH_SIZE, tile_r_max=2048):
    """MaskedAutoencoder.forward_loss with norm_pix_loss=True (Pallas hot path).

    tile_r_max: packed rows per tile (2048 rows = 16384 patches ≈ 12.5 MiB of
    double-buffered VMEM; safe on v5e/v6e/v7x).  Must be a multiple of 8.
    """
    assert tile_r_max % 8 == 0
    target = patchify(imgs, p)                       # (N, L, D)
    N, L, D = target.shape
    M = N * L

    # Lane-dense packing: PACK patches per packed row so the minor (lane) dim is
    # a multiple of 128 (D=48 -> PACK=8, ROW_W=384).  The reshape is a free view.
    PACK = 128 // math.gcd(D, 128)
    ROW_W = PACK * D

    num_preds = jnp.sum(mask)            # denominator computed once, in the wrapper

    t_flat = target.reshape(M, D)        # no wrapper astype; kernel upcasts (bf16-ready)
    p_flat = pred.reshape(M, D)
    m_flat = mask.reshape(M).astype(jnp.float32)

    if M % PACK != 0:
        # Rare fallback (N*L not a multiple of PACK): pad to a packable row
        # count.  This is the only remaining pad and typical MAE shapes never
        # hit it; the common path below streams the arrays with zero copies.
        M_pad = _round_up(M, PACK)
        t_flat = jnp.pad(t_flat, ((0, M_pad - M), (0, 0)))
        p_flat = jnp.pad(p_flat, ((0, M_pad - M), (0, 0)))
        m_flat = jnp.pad(m_flat, ((0, M_pad - M),))
        M = M_pad

    R = M // PACK                                     # packed rows
    t_pk = t_flat.reshape(R, ROW_W)                   # contiguous row-major -> free view
    p_pk = p_flat.reshape(R, ROW_W)
    m_pk = m_flat.reshape(R, PACK)

    if R <= tile_r_max:
        tile_r = R            # block first dim == full array dim (always legal)
    else:
        tile_r = tile_r_max   # multiple of 8; partial tail masked in-kernel

    grid_n = pl.cdiv(R, tile_r)
    mask_tail = (R % tile_r) != 0

    kernel = functools.partial(
        _masked_loss_kernel, patch_dim=D, pack=PACK, tile_r=tile_r,
        total_rows=R, mask_tail=mask_tail)

    partials = pl.pallas_call(
        kernel,
        out_shape=jax.ShapeDtypeStruct((grid_n, 8, 128), jnp.float32),
        grid_spec=pltpu.PrefetchScalarGridSpec(
            num_scalar_prefetch=0,
            grid=(grid_n,),
            in_specs=[
                pl.BlockSpec((tile_r, ROW_W), lambda i: (i, 0)),   # target tile
                pl.BlockSpec((tile_r, ROW_W), lambda i: (i, 0)),   # pred tile
                pl.BlockSpec((tile_r, PACK), lambda i: (i, 0)),    # mask tile
            ],
            out_specs=pl.BlockSpec((1, 8, 128), lambda i: (i, 0, 0)),
        ),
        compiler_params=pltpu.CompilerParams(
            # Independent partial sums per tile -> shardable across TCs.
            # TODO(synk): on v7x, verify via trace that both TensorCores run;
            # if one idles, switch this axis to pltpu.CORE_PARALLEL.
            dimension_semantics=("parallel",),
            vmem_limit_bytes=32 * 1024 * 1024,   # v7x-safe (64 MiB physical)
        ),
    )(t_pk, p_pk, m_pk)

    loss_sum = jnp.sum(partials[:, 0, 0])
    # Same semantics as the reference: divides by mask.sum() (NaN if mask is all-zero).
    return loss_sum / num_preds


def masked_autoencoder_forward(imgs, pred, mask):
    """Full forward (loss, pred, mask).

    # TODO(synk): forward_encoder / forward_decoder raise NotImplementedError in
    # the reference module; `pred` and `mask` are provided by the caller here
    # (synthetic decoder output + masking_id) instead of being computed.
    """
    loss = forward_loss(imgs, pred, mask)
    return loss, pred, mask


# ------------------------ pure-JAX reference ----------------------------- #

def _ref_forward_loss(imgs, pred, mask, p=DECODER_PATCH_SIZE):
    target = patchify(imgs, p)
    D = target.shape[-1]
    mean = jnp.mean(target, axis=-1, keepdims=True)
    var = jnp.sum((target - mean) ** 2, axis=-1, keepdims=True) / (D - 1)
    target = (target - mean) / jnp.sqrt(var + 1e-6)
    loss = jnp.mean((pred - target) ** 2, axis=-1)
    return jnp.sum(loss * mask) / jnp.sum(mask)


# -------------------------------- main ----------------------------------- #

if __name__ == "__main__":
    key = jax.random.PRNGKey(0)
    k_img, k_pred, k_mask, k_img2, k_pred2, k_mask2 = jax.random.split(key, 6)

    p = DECODER_PATCH_SIZE
    C, H, W_img = 3, 16, 16
    L = (H // p) * (W_img // p)      # 16 patches
    D = p * p * C                    # 48

    # --- Case 1: default config (single full-R tile, grid = 1) ---
    N = 2
    imgs = jax.random.normal(k_img, (N, C, H, W_img), jnp.float32)
    ids_keep, ids_restore, mask = masking_id(k_mask, N, L, mask_ratio=0.75)
    pred = jax.random.normal(k_pred, (N, L, D), jnp.float32)

    loss, pred_out, mask_out = masked_autoencoder_forward(imgs, pred, mask)
    loss = jax.block_until_ready(loss)

    ref = _ref_forward_loss(imgs, pred, mask)
    # Tolerance leaves headroom for MXU f32 contraction differences vs the XLA reference.
    assert jnp.allclose(loss, ref, rtol=2e-3, atol=2e-3), (float(loss), float(ref))
    assert pred_out.shape == (N, L, D)
    assert mask_out.shape == (N, L)

    # --- Case 2: force grid > 1 with a partial tail tile (exercises the
    #     in-kernel row-validity masking that replaced the wrapper jnp.pad) ---
    N2 = 6                                             # R = 12 packed rows
    imgs2 = jax.random.normal(k_img2, (N2, C, H, W_img), jnp.float32)
    _, _, mask2 = masking_id(k_mask2, N2, L, mask_ratio=0.75)
    pred2 = jax.random.normal(k_pred2, (N2, L, D), jnp.float32)
    loss2 = jax.block_until_ready(forward_loss(imgs2, pred2, mask2, tile_r_max=8))
    ref2 = _ref_forward_loss(imgs2, pred2, mask2)
    assert jnp.allclose(loss2, ref2, rtol=2e-3, atol=2e-3), (float(loss2), float(ref2))

    print("KERNEL_OK")
</pallas_src>

<mosaic_0001>
module attributes {stable_mosaic.version = 11 : i64} {
  func.func @_masked_loss_kernel(%arg0: i32, %arg1: memref<4x384xf32, #tpu.memory_space<vmem>>, %arg2: memref<4x384xf32, #tpu.memory_space<vmem>>, %arg3: memref<4x8xf32, #tpu.memory_space<vmem>>, %arg4: memref<1x8x128xf32, #tpu.memory_space<vmem>>) attributes {dimension_semantics = [#tpu.dimension_semantics<parallel>], iteration_bounds = array<i64: 1>, scalar_prefetch = 0 : i64, scratch_operands = 0 : i64, tpu.core_type = #tpu.core_type<tc>, window_params = [{transform_indices = @transform_0, window_bounds = array<i64: 4, 384>}, {transform_indices = @transform_1, window_bounds = array<i64: 4, 384>}, {transform_indices = @transform_2, window_bounds = array<i64: 4, 8>}, {transform_indices = @transform_3, window_bounds = array<i64: 1, 8, 128>}]} {
    %c0 = arith.constant 0 : index
    %c0_0 = arith.constant 0 : index
    %0 = vector.load %arg1[%c0, %c0_0] : memref<4x384xf32, #tpu.memory_space<vmem>>, vector<4x384xf32>
    %c0_1 = arith.constant 0 : index
    %c0_2 = arith.constant 0 : index
    %1 = vector.load %arg2[%c0_1, %c0_2] : memref<4x384xf32, #tpu.memory_space<vmem>>, vector<4x384xf32>
    %c0_3 = arith.constant 0 : index
    %c0_4 = arith.constant 0 : index
    %2 = vector.load %arg3[%c0_3, %c0_4] : memref<4x8xf32, #tpu.memory_space<vmem>>, vector<4x8xf32>
    %3 = tpu.iota {dimensions = array<i32: 0>} : vector<384x8xi32>
    %4 = tpu.iota {dimensions = array<i32: 1>} : vector<384x8xi32>
    %c48_i32 = arith.constant 48 : i32
    %5 = vector.broadcast %c48_i32 : i32 to vector<384x8xi32>
    %6 = arith.muli %4, %5 : vector<384x8xi32>
    %7 = arith.cmpi sge, %3, %6 : vector<384x8xi32>
    %c1_i32 = arith.constant 1 : i32
    %8 = vector.broadcast %c1_i32 : i32 to vector<384x8xi32>
    %9 = arith.addi %4, %8 : vector<384x8xi32>
    %c48_i32_5 = arith.constant 48 : i32
    %10 = vector.broadcast %c48_i32_5 : i32 to vector<384x8xi32>
    %11 = arith.muli %9, %10 : vector<384x8xi32>
    %12 = arith.cmpi slt, %3, %11 : vector<384x8xi32>
    %13 = arith.andi %7, %12 : vector<384x8xi1>
    %14 = arith.extui %13 : vector<384x8xi1> to vector<384x8xi32>
    %15 = arith.sitofp %14 : vector<384x8xi32> to vector<384x8xf32>
    %16 = tpu.iota {dimensions = array<i32: 1>} : vector<8x384xi32>
    %17 = tpu.iota {dimensions = array<i32: 0>} : vector<8x384xi32>
    %c48_i32_6 = arith.constant 48 : i32
    %18 = vector.broadcast %c48_i32_6 : i32 to vector<8x384xi32>
    %19 = arith.muli %17, %18 : vector<8x384xi32>
    %20 = arith.cmpi sge, %16, %19 : vector<8x384xi32>
    %c1_i32_7 = arith.constant 1 : i32
    %21 = vector.broadcast %c1_i32_7 : i32 to vector<8x384xi32>
    %22 = arith.addi %17, %21 : vector<8x384xi32>
    %c48_i32_8 = arith.constant 48 : i32
    %23 = vector.broadcast %c48_i32_8 : i32 to vector<8x384xi32>
    %24 = arith.muli %22, %23 : vector<8x384xi32>
    %25 = arith.cmpi slt, %16, %24 : vector<8x384xi32>
    %26 = arith.andi %20, %25 : vector<8x384xi1>
    %27 = arith.extui %26 : vector<8x384xi1> to vector<8x384xi32>
    %28 = arith.sitofp %27 : vector<8x384xi32> to vector<8x384xf32>
    %cst = arith.constant dense<0.000000e+00> : vector<4x8xf32>
    %29 = tpu.matmul %0, %15, %cst {dimension_numbers = #tpu.dot_dimension_numbers<[1], [0], [0], [1], [0, 0, 1, 1], [], []>} : vector<4x384xf32>, vector<384x8xf32>, vector<4x8xf32> -> vector<4x8xf32>
    %cst_9 = arith.constant 0.020833334 : f32
    %30 = vector.broadcast %cst_9 : f32 to vector<4x8xf32>
    %31 = arith.mulf %29, %30 : vector<4x8xf32>
    %cst_10 = arith.constant dense<0.000000e+00> : vector<4x384xf32>
    %32 = tpu.matmul %31, %28, %cst_10 {dimension_numbers = #tpu.dot_dimension_numbers<[1], [0], [0], [1], [0, 0, 1, 1], [], []>} : vector<4x8xf32>, vector<8x384xf32>, vector<4x384xf32> -> vector<4x384xf32>
    %33 = arith.subf %0, %32 : vector<4x384xf32>
    %34 = arith.mulf %33, %33 : vector<4x384xf32>
    %cst_11 = arith.constant dense<0.000000e+00> : vector<4x8xf32>
    %35 = tpu.matmul %34, %15, %cst_11 {dimension_numbers = #tpu.dot_dimension_numbers<[1], [0], [0], [1], [0, 0, 1, 1], [], []>} : vector<4x384xf32>, vector<384x8xf32>, vector<4x8xf32> -> vector<4x8xf32>
    %cst_12 = arith.constant 0.0212765951 : f32
    %36 = vector.broadcast %cst_12 : f32 to vector<4x8xf32>
    %37 = arith.mulf %35, %36 : vector<4x8xf32>
    %cst_13 = arith.constant 9.99999997E-7 : f32
    %38 = vector.broadcast %cst_13 : f32 to vector<4x8xf32>
    %39 = arith.addf %37, %38 : vector<4x8xf32>
    %40 = math.rsqrt %39 : vector<4x8xf32>
    %cst_14 = arith.constant dense<0.000000e+00> : vector<4x384xf32>
    %41 = tpu.matmul %40, %28, %cst_14 {dimension_numbers = #tpu.dot_dimension_numbers<[1], [0], [0], [1], [0, 0, 1, 1], [], []>} : vector<4x8xf32>, vector<8x384xf32>, vector<4x384xf32> -> vector<4x384xf32>
    %42 = arith.mulf %33, %41 : vector<4x384xf32>
    %43 = arith.subf %1, %42 : vector<4x384xf32>
    %44 = arith.mulf %43, %43 : vector<4x384xf32>
    %cst_15 = arith.constant dense<0.000000e+00> : vector<4x8xf32>
    %45 = tpu.matmul %44, %15, %cst_15 {dimension_numbers = #tpu.dot_dimension_numbers<[1], [0], [0], [1], [0, 0, 1, 1], [], []>} : vector<4x384xf32>, vector<384x8xf32>, vector<4x8xf32> -> vector<4x8xf32>
    %cst_16 = arith.constant 0.020833334 : f32
    %46 = vector.broadcast %cst_16 : f32 to vector<4x8xf32>
    %47 = arith.mulf %45, %46 : vector<4x8xf32>
    %48 = arith.mulf %47, %2 : vector<4x8xf32>
    %49 = vector.shape_cast %48 : vector<4x8xf32> to vector<1x4x8xf32>
    %cst_17 = arith.constant dense<0.000000e+00> : vector<1xf32>
    %50 = vector.multi_reduction <add>, %49, %cst_17 [1, 2] : vector<1x4x8xf32> to vector<1xf32>
    %51 = vector.shape_cast %50 : vector<1xf32> to vector<1x1x1xf32>
    %52 = vector.extract %51[0, 0, 0] : f32 from vector<1x1x1xf32>
    %53 = vector.broadcast %52 : f32 to vector<1x8x128xf32>
    %c0_18 = arith.constant 0 : index
    %c0_19 = arith.constant 0 : index
    %c0_20 = arith.constant 0 : index
    %54 = vector.load %arg4[%c0_18, %c0_19, %c0_20] : memref<1x8x128xf32, #tpu.memory_space<vmem>>, vector<1x8x128xf32>
    tpu.vector_store %arg4[%c0_18, %c0_19, %c0_20], %53 {strides = array<i32>} : memref<1x8x128xf32, #tpu.memory_space<vmem>>, vector<1x8x128xf32>,
    return
  }
  func.func @transform_0(%arg0: i32) -> (i32, i32) {
    %c0_i32 = arith.constant 0 : i32
    %c0_i32_0 = arith.constant 0 : i32
    return %arg0, %c0_i32 : i32, i32
  }
  func.func @transform_1(%arg0: i32) -> (i32, i32) {
    %c0_i32 = arith.constant 0 : i32
    %c0_i32_0 = arith.constant 0 : i32
    return %arg0, %c0_i32 : i32, i32
  }
  func.func @transform_2(%arg0: i32) -> (i32, i32) {
    %c0_i32 = arith.constant 0 : i32
    %c0_i32_0 = arith.constant 0 : i32
    return %arg0, %c0_i32 : i32, i32
  }
  func.func @transform_3(%arg0: i32) -> (i32, i32, i32) {
    %c0_i32 = arith.constant 0 : i32
    %c0_i32_0 = arith.constant 0 : i32
    %c0_i32_1 = arith.constant 0 : i32
    return %arg0, %c0_i32, %c0_i32_0 : i32, i32, i32
  }
}

</mosaic_0001>

<llo_original>
// kernel: tpu_custom_call.1
$region0: #{tpu_custom_call.1}
  #allocation0 [shape = 'u32[]', space=smem, size = 0x4, offset = 0x4, fixed_abs, tag = 'smem constant byte address 0x4 - core index']
  #allocation1 [shape = 'u32[144,128]{1,0:T(1,128)}', space=vmem, size = 0x12000, scoped, tag = 'internal scratch']
  %s0 = inlined_call_operand.hbm [shape: f32[4,384], index: 0, kind: input, shape index: {}]
  %s1 = inlined_call_operand.hbm [shape: f32[4,384], index: 1, kind: input, shape index: {}]
  %s2 = inlined_call_operand.vmem [shape: f32[4,8], index: 2, kind: input, shape index: {}]
  %s3 = inlined_call_operand.hbm [shape: f32[1,8,128], index: 3, kind: output, shape index: {}]
  %s4 = sld [smem:[#allocation0]]
  $region30: #{tpu_custom_call.1} parent=0
    _
  %s6 = ssub.s32 1, %s4
  %s7 = scalar_select 0, %s6, %s4
  $region1: #{tpu_custom_call.1} parent=0
    #allocation2 [shape = 'u8[6144]{0}', space=vmem, size = 0x1800, scoped, tag = 'input window, operand 0, single buffered']
    #allocation3 [shape = 's32[1]{0}', space=sflag, size = 0x4, scoped, tag = 'scoped memory for tpu_custom_call.1']
    #allocation4 [shape = 's32[1]{0}', space=sflag, size = 0x4, scoped, tag = 'scoped memory for tpu_custom_call.1']
    #allocation5 [shape = 'u8[6144]{0}', space=vmem, size = 0x1800, scoped, tag = 'input window, operand 1, single buffered']
    #allocation6 [shape = 's32[1]{0}', space=sflag, size = 0x4, scoped, tag = 'scoped memory for tpu_custom_call.1']
    #allocation7 [shape = 'u8[4096]{0}', space=vmem, size = 0x1000, scoped, tag = 'output window, operand 0, single buffered']
    %8 = vsyncpa [#allocation3], 0
    %9 = vsyncpa [#allocation6], 0
    %10 = vsyncpa [#allocation4], 0
    // Predicated region
    $region2: #{tpu_custom_call.1} parent=1 // pred_check
      _
    $region3: #{tpu_custom_call.1} parent=1 // pred_check_branch
      %12 = sbr.rel (0) target = $region5
    $region4: #{tpu_custom_call.1} parent=1 // pred_region
      %s14 = ssub.s32 192, 192
      %15 = vsyncadd [#allocation3], %s14
      %s17 = sshll.u32 [#allocation2], 4
      %s18 = int_to_ptr.vmem [resolvable:$true] %s17
      %20 = dma.hbm_to_vmem [thread:$0]  %s0, 192, %s18, [#allocation3]
    $region5: #{tpu_custom_call.1} parent=1 // pred_fallthru
      _
    // Predicated region
    $region6: #{tpu_custom_call.1} parent=1 // pred_check
      _
    $region7: #{tpu_custom_call.1} parent=1 // pred_check_branch
      %22 = sbr.rel (0) target = $region9
    $region8: #{tpu_custom_call.1} parent=1 // pred_region
      %s24 = ssub.s32 192, 192
      %25 = vsyncadd [#allocation6], %s24
      %s27 = sshll.u32 [#allocation5], 4
      %s28 = int_to_ptr.vmem [resolvable:$true] %s27
      %30 = dma.hbm_to_vmem [thread:$0]  %s1, 192, %s28, [#allocation6]
    $region9: #{tpu_custom_call.1} parent=1 // pred_fallthru
      _
    // Predicated region
    $region10: #{tpu_custom_call.1} parent=1 // pred_check
      _
    $region11: #{tpu_custom_call.1} parent=1 // pred_check_branch
      %32 = sbr.rel (0) target = $region13
    $region12: #{tpu_custom_call.1} parent=1 // pred_region
      _
    $region13: #{tpu_custom_call.1} parent=1 // pred_fallthru
      _
    // Predicated region
    $region14: #{tpu_custom_call.1} parent=1 // pred_check
      _
    $region15: #{tpu_custom_call.1} parent=1 // pred_check_branch
      %34 = sbr.rel (0) target = $region17
    $region16: #{tpu_custom_call.1} parent=1 // pred_region
      %35 = dma.done [#allocation3], 192
    $region17: #{tpu_custom_call.1} parent=1 // pred_fallthru
      _
    // Predicated region
    $region18: #{tpu_custom_call.1} parent=1 // pred_check
      _
    $region19: #{tpu_custom_call.1} parent=1 // pred_check_branch
      %37 = sbr.rel (0) target = $region21
    $region20: #{tpu_custom_call.1} parent=1 // pred_region
      %38 = dma.done [#allocation6], 192
    $region21: #{tpu_custom_call.1} parent=1 // pred_fallthru
      _
    %v39 = vld [vmem:[#allocation2] sm:$0xff]
    %v40 = vld [vmem:[#allocation2 + $0x8] sm:$0xf]
    %v41 = vld [vmem:[#allocation5] sm:$0xff]
    %v42 = vld [vmem:[#allocation5 + $0x8] sm:$0xf]
    %v43 = vld [vmem:[%s2] sm:$0xf]
    %v44 = vlaneseq
    %v45 = vshrl.u32 %v44, 7
    %v46 = vadd.s32 %v45, 8
    %v47 = vadd.s32 %v45, 16
    %v48 = vadd.s32 %v45, 24
    %v49 = vadd.s32 %v45, 32
    %v50 = vadd.s32 %v45, 40
    %v51 = vadd.s32 %v45, 48
    %v52 = vadd.s32 %v45, 56
    %v53 = vadd.s32 %v45, 64
    %v54 = vadd.s32 %v45, 72
    %v55 = vadd.s32 %v45, 80
    %v56 = vadd.s32 %v45, 88
    %v57 = vadd.s32 %v45, 96
    %v58 = vadd.s32 %v45, 104
    %v59 = vadd.s32 %v45, 112
    %v60 = vadd.s32 %v45, 120
    %v61 = vadd.s32 %v45, 128
    %v62 = vadd.s32 %v45, 136
    %v63 = vadd.s32 %v45, 144
    %v64 = vadd.s32 %v45, 152
    %v65 = vadd.s32 %v45, 160
    %v66 = vadd.s32 %v45, 168
    %v67 = vadd.s32 %v45, 176
    %v68 = vadd.s32 %v45, 184
    %v69 = vadd.s32 %v45, 192
    %v70 = vadd.s32 %v45, 200
    %v71 = vadd.s32 %v45, 208
    %v72 = vadd.s32 %v45, 216
    %v73 = vadd.s32 %v45, 224
    %v74 = vadd.s32 %v45, 232
    %v75 = vadd.s32 %v45, 240
    %v76 = vadd.s32 %v45, 248
    %v77 = vadd.s32 %v45, 256
    %v78 = vadd.s32 %v45, 264
    %v79 = vadd.s32 %v45, 272
    %v80 = vadd.s32 %v45, 280
    %v81 = vadd.s32 %v45, 288
    %v82 = vadd.s32 %v45, 296
    %v83 = vadd.s32 %v45, 304
    %v84 = vadd.s32 %v45, 312
    %v85 = vadd.s32 %v45, 320
    %v86 = vadd.s32 %v45, 328
    %v87 = vadd.s32 %v45, 336
    %v88 = vadd.s32 %v45, 344
    %v89 = vadd.s32 %v45, 352
    %v90 = vadd.s32 %v45, 360
    %v91 = vadd.s32 %v45, 368
    %v92 = vadd.s32 %v45, 376
    %v93 = vlaneseq
    %v94 = vand.u32 %v93, 127
    %v95 = vmul.u32 %v94, 48
    %vm96 = vcmp.ge.s32.totalorder %v45, %v95
    %vm97 = vcmp.ge.s32.totalorder %v46, %v95
    %vm98 = vcmp.ge.s32.totalorder %v47, %v95
    %vm99 = vcmp.ge.s32.totalorder %v48, %v95
    %vm100 = vcmp.ge.s32.totalorder %v49, %v95
    %vm101 = vcmp.ge.s32.totalorder %v50, %v95
    %vm102 = vcmp.ge.s32.totalorder %v51, %v95
    %vm103 = vcmp.ge.s32.totalorder %v52, %v95
    %vm104 = vcmp.ge.s32.totalorder %v53, %v95
    %vm105 = vcmp.ge.s32.totalorder %v54, %v95
    %vm106 = vcmp.ge.s32.totalorder %v55, %v95
    %vm107 = vcmp.ge.s32.totalorder %v56, %v95
    %vm108 = vcmp.ge.s32.totalorder %v57, %v95
    %vm109 = vcmp.ge.s32.totalorder %v58, %v95
    %vm110 = vcmp.ge.s32.totalorder %v59, %v95
    %vm111 = vcmp.ge.s32.totalorder %v60, %v95
    %vm112 = vcmp.ge.s32.totalorder %v61, %v95
    %vm113 = vcmp.ge.s32.totalorder %v62, %v95
    %vm114 = vcmp.ge.s32.totalorder %v63, %v95
    %vm115 = vcmp.ge.s32.totalorder %v64, %v95
    %vm116 = vcmp.ge.s32.totalorder %v65, %v95
    %vm117 = vcmp.ge.s32.totalorder %v66, %v95
    %vm118 = vcmp.ge.s32.totalorder %v67, %v95
    %vm119 = vcmp.ge.s32.totalorder %v68, %v95
    %vm120 = vcmp.ge.s32.totalorder %v69, %v95
    %vm121 = vcmp.ge.s32.totalorder %v70, %v95
    %vm122 = vcmp.ge.s32.totalorder %v71, %v95
    %vm123 = vcmp.ge.s32.totalorder %v72, %v95
    %vm124 = vcmp.ge.s32.totalorder %v73, %v95
    %vm125 = vcmp.ge.s32.totalorder %v74, %v95
    %vm126 = vcmp.ge.s32.totalorder %v75, %v95
    %vm127 = vcmp.ge.s32.totalorder %v76, %v95
    %vm128 = vcmp.ge.s32.totalorder %v77, %v95
    %vm129 = vcmp.ge.s32.totalorder %v78, %v95
    %vm130 = vcmp.ge.s32.totalorder %v79, %v95
    %vm131 = vcmp.ge.s32.totalorder %v80, %v95
    %vm132 = vcmp.ge.s32.totalorder %v81, %v95
    %vm133 = vcmp.ge.s32.totalorder %v82, %v95
    %vm134 = vcmp.ge.s32.totalorder %v83, %v95
    %vm135 = vcmp.ge.s32.totalorder %v84, %v95
    %vm136 = vcmp.ge.s32.totalorder %v85, %v95
    %vm137 = vcmp.ge.s32.totalorder %v86, %v95
    %vm138 = vcmp.ge.s32.totalorder %v87, %v95
    %vm139 = vcmp.ge.s32.totalorder %v88, %v95
    %vm140 = vcmp.ge.s32.totalorder %v89, %v95
    %vm141 = vcmp.ge.s32.totalorder %v90, %v95
    %vm142 = vcmp.ge.s32.totalorder %v91, %v95
    %vm143 = vcmp.ge.s32.totalorder %v92, %v95
    %v144 = vadd.s32 %v94, 1
    %v145 = vmul.u32 %v144, 48
    %vm146 = vcmp.lt.s32.totalorder %v45, %v145
    %vm147 = vcmp.lt.s32.totalorder %v46, %v145
    %vm148 = vcmp.lt.s32.totalorder %v47, %v145
    %vm149 = vcmp.lt.s32.totalorder %v48, %v145
    %vm150 = vcmp.lt.s32.totalorder %v49, %v145
    %vm151 = vcmp.lt.s32.totalorder %v50, %v145
    %vm152 = vcmp.lt.s32.totalorder %v51, %v145
    %vm153 = vcmp.lt.s32.totalorder %v52, %v145
    %vm154 = vcmp.lt.s32.totalorder %v53, %v145
    %vm155 = vcmp.lt.s32.totalorder %v54, %v145
    %vm156 = vcmp.lt.s32.totalorder %v55, %v145
    %vm157 = vcmp.lt.s32.totalorder %v56, %v145
    %vm158 = vcmp.lt.s32.totalorder %v57, %v145
    %vm159 = vcmp.lt.s32.totalorder %v58, %v145
    %vm160 = vcmp.lt.s32.totalorder %v59, %v145
    %vm161 = vcmp.lt.s32.totalorder %v60, %v145
    %vm162 = vcmp.lt.s32.totalorder %v61, %v145
    %vm163 = vcmp.lt.s32.totalorder %v62, %v145
    %vm164 = vcmp.lt.s32.totalorder %v63, %v145
    %vm165 = vcmp.lt.s32.totalorder %v64, %v145
    %vm166 = vcmp.lt.s32.totalorder %v65, %v145
    %vm167 = vcmp.lt.s32.totalorder %v66, %v145
    %vm168 = vcmp.lt.s32.totalorder %v67, %v145
    %vm169 = vcmp.lt.s32.totalorder %v68, %v145
    %vm170 = vcmp.lt.s32.totalorder %v69, %v145
    %vm171 = vcmp.lt.s32.totalorder %v70, %v145
    %vm172 = vcmp.lt.s32.totalorder %v71, %v145
    %vm173 = vcmp.lt.s32.totalorder %v72, %v145
    %vm174 = vcmp.lt.s32.totalorder %v73, %v145
    %vm175 = vcmp.lt.s32.totalorder %v74, %v145
    %vm176 = vcmp.lt.s32.totalorder %v75, %v145
    %vm177 = vcmp.lt.s32.totalorder %v76, %v145
    %vm178 = vcmp.lt.s32.totalorder %v77, %v145
    %vm179 = vcmp.lt.s32.totalorder %v78, %v145
    %vm180 = vcmp.lt.s32.totalorder %v79, %v145
    %vm181 = vcmp.lt.s32.totalorder %v80, %v145
    %vm182 = vcmp.lt.s32.totalorder %v81, %v145
    %vm183 = vcmp.lt.s32.totalorder %v82, %v145
    %vm184 = vcmp.lt.s32.totalorder %v83, %v145
    %vm185 = vcmp.lt.s32.totalorder %v84, %v145
    %vm186 = vcmp.lt.s32.totalorder %v85, %v145
    %vm187 = vcmp.lt.s32.totalorder %v86, %v145
    %vm188 = vcmp.lt.s32.totalorder %v87, %v145
    %vm189 = vcmp.lt.s32.totalorder %v88, %v145
    %vm190 = vcmp.lt.s32.totalorder %v89, %v145
    %vm191 = vcmp.lt.s32.totalorder %v90, %v145
    %vm192 = vcmp.lt.s32.totalorder %v91, %v145
    %vm193 = vcmp.lt.s32.totalorder %v92, %v145
    %vm194 = vmand %vm96, %vm146
    %vm195 = vmand %vm97, %vm147
    %vm196 = vmand %vm98, %vm148
    %vm197 = vmand %vm99, %vm149
    %vm198 = vmand %vm100, %vm150
    %vm199 = vmand %vm101, %vm151
    %vm200 = vmand %vm102, %vm152
    %vm201 = vmand %vm103, %vm153
    %vm202 = vmand %vm104, %vm154
    %vm203 = vmand %vm105, %vm155
    %vm204 = vmand %vm106, %vm156
    %vm205 = vmand %vm107, %vm157
    %vm206 = vmand %vm108, %vm158
    %vm207 = vmand %vm109, %vm159
    %vm208 = vmand %vm110, %vm160
    %vm209 = vmand %vm111, %vm161
    %vm210 = vmand %vm112, %vm162
    %vm211 = vmand %vm113, %vm163
    %vm212 = vmand %vm114, %vm164
    %vm213 = vmand %vm115, %vm165
    %vm214 = vmand %vm116, %vm166
    %vm215 = vmand %vm117, %vm167
    %vm216 = vmand %vm118, %vm168
    %vm217 = vmand %vm119, %vm169
    %vm218 = vmand %vm120, %vm170
    %vm219 = vmand %vm121, %vm171
    %vm220 = vmand %vm122, %vm172
    %vm221 = vmand %vm123, %vm173
    %vm222 = vmand %vm124, %vm174
    %vm223 = vmand %vm125, %vm175
    %vm224 = vmand %vm126, %vm176
    %vm225 = vmand %vm127, %vm177
    %vm226 = vmand %vm128, %vm178
    %vm227 = vmand %vm129, %vm179
    %vm228 = vmand %vm130, %vm180
    %vm229 = vmand %vm131, %vm181
    %vm230 = vmand %vm132, %vm182
    %vm231 = vmand %vm133, %vm183
    %vm232 = vmand %vm134, %vm184
    %vm233 = vmand %vm135, %vm185
    %vm234 = vmand %vm136, %vm186
    %vm235 = vmand %vm137, %vm187
    %vm236 = vmand %vm138, %vm188
    %vm237 = vmand %vm139, %vm189
    %vm238 = vmand %vm140, %vm190
    %vm239 = vmand %vm141, %vm191
    %vm240 = vmand %vm142, %vm192
    %vm241 = vmand %vm143, %vm193
    %v242 = vsel %vm194, 1, 0
    %v243 = vsel %vm195, 1, 0
    %v244 = vsel %vm196, 1, 0
    %v245 = vsel %vm197, 1, 0
    %v246 = vsel %vm198, 1, 0
    %v247 = vsel %vm199, 1, 0
    %v248 = vsel %vm200, 1, 0
    %v249 = vsel %vm201, 1, 0
    %v250 = vsel %vm202, 1, 0
    %v251 = vsel %vm203, 1, 0
    %v252 = vsel %vm204, 1, 0
    %v253 = vsel %vm205, 1, 0
    %v254 = vsel %vm206, 1, 0
    %v255 = vsel %vm207, 1, 0
    %v256 = vsel %vm208, 1, 0
    %v257 = vsel %vm209, 1, 0
    %v258 = vsel %vm210, 1, 0
    %v259 = vsel %vm211, 1, 0
    %v260 = vsel %vm212, 1, 0
    %v261 = vsel %vm213, 1, 0
    %v262 = vsel %vm214, 1, 0
    %v263 = vsel %vm215, 1, 0
    %v264 = vsel %vm216, 1, 0
    %v265 = vsel %vm217, 1, 0
    %v266 = vsel %vm218, 1, 0
    %v267 = vsel %vm219, 1, 0
    %v268 = vsel %vm220, 1, 0
    %v269 = vsel %vm221, 1, 0
    %v270 = vsel %vm222, 1, 0
    %v271 = vsel %vm223, 1, 0
    %v272 = vsel %vm224, 1, 0
    %v273 = vsel %vm225, 1, 0
    %v274 = vsel %vm226, 1, 0
    %v275 = vsel %vm227, 1, 0
    %v276 = vsel %vm228, 1, 0
    %v277 = vsel %vm229, 1, 0
    %v278 = vsel %vm230, 1, 0
    %v279 = vsel %vm231, 1, 0
    %v280 = vsel %vm232, 1, 0
    %v281 = vsel %vm233, 1, 0
    %v282 = vsel %vm234, 1, 0
    %v283 = vsel %vm235, 1, 0
    %v284 = vsel %vm236, 1, 0
    %v285 = vsel %vm237, 1, 0
    %v286 = vsel %vm238, 1, 0
    %v287 = vsel %vm239, 1, 0
    %v288 = vsel %vm240, 1, 0
    %v289 = vsel %vm241, 1, 0
    %v290 = vcvt.s32.f32 %v242
    %v291 = vcvt.s32.f32 %v243
    %v292 = vcvt.s32.f32 %v244
    %v293 = vcvt.s32.f32 %v245
    %v294 = vcvt.s32.f32 %v246
    %v295 = vcvt.s32.f32 %v247
    %v296 = vcvt.s32.f32 %v248
    %v297 = vcvt.s32.f32 %v249
    %v298 = vcvt.s32.f32 %v250
    %v299 = vcvt.s32.f32 %v251
    %v300 = vcvt.s32.f32 %v252
    %v301 = vcvt.s32.f32 %v253
    %v302 = vcvt.s32.f32 %v254
    %v303 = vcvt.s32.f32 %v255
    %v304 = vcvt.s32.f32 %v256
    %v305 = vcvt.s32.f32 %v257
    %v306 = vcvt.s32.f32 %v258
    %v307 = vcvt.s32.f32 %v259
    %v308 = vcvt.s32.f32 %v260
    %v309 = vcvt.s32.f32 %v261
    %v310 = vcvt.s32.f32 %v262
    %v311 = vcvt.s32.f32 %v263
    %v312 = vcvt.s32.f32 %v264
    %v313 = vcvt.s32.f32 %v265
    %v314 = vcvt.s32.f32 %v266
    %v315 = vcvt.s32.f32 %v267
    %v316 = vcvt.s32.f32 %v268
    %v317 = vcvt.s32.f32 %v269
    %v318 = vcvt.s32.f32 %v270
    %v319 = vcvt.s32.f32 %v271
    %v320 = vcvt.s32.f32 %v272
    %v321 = vcvt.s32.f32 %v273
    %v322 = vcvt.s32.f32 %v274
    %v323 = vcvt.s32.f32 %v275
    %v324 = vcvt.s32.f32 %v276
    %v325 = vcvt.s32.f32 %v277
    %v326 = vcvt.s32.f32 %v278
    %v327 = vcvt.s32.f32 %v279
    %v328 = vcvt.s32.f32 %v280
    %v329 = vcvt.s32.f32 %v281
    %v330 = vcvt.s32.f32 %v282
    %v331 = vcvt.s32.f32 %v283
    %v332 = vcvt.s32.f32 %v284
    %v333 = vcvt.s32.f32 %v285
    %v334 = vcvt.s32.f32 %v286
    %v335 = vcvt.s32.f32 %v287
    %v336 = vcvt.s32.f32 %v288
    %v337 = vcvt.s32.f32 %v289
    %v338 = vadd.s32 %v94, 128
    %v339 = vadd.s32 %v94, 256
    %v340 = vmul.u32 %v45, 48
    %vm341 = vcmp.ge.s32.totalorder %v94, %v340
    %vm342 = vcmp.ge.s32.totalorder %v338, %v340
    %vm343 = vcmp.ge.s32.totalorder %v339, %v340
    %v344 = vadd.s32 %v45, 1
    %v345 = vmul.u32 %v344, 48
    %vm346 = vcmp.lt.s32.totalorder %v94, %v345
    %vm347 = vcmp.lt.s32.totalorder %v338, %v345
    %vm348 = vcmp.lt.s32.totalorder %v339, %v345
    %vm349 = vmand %vm341, %vm346
    %vm350 = vmand %vm342, %vm347
    %vm351 = vmand %vm343, %vm348
    %v352 = vsel %vm349, 1, 0
    %v353 = vsel %vm350, 1, 0
    %v354 = vsel %vm351, 1, 0
    %v355 = vcvt.s32.f32 %v352
    %v356 = vcvt.s32.f32 %v353
    %v357 = vcvt.s32.f32 %v354
    %v359 = vcombine.high %v39, %v39
    %361 = vmatprep.subr.mxu0 0.0
    %362 = vmatpush1.msra.mxu0 %v290
    %363 = vmatprep.subr.mxu0 0.0
    %364 = vmatpush1.msra.mxu0 %v291
    %365 = vmatprep.subr.mxu0 0.0
    %366 = vmatpush1.msra.mxu0 %v292
    %367 = vmatprep.subr.mxu0 0.0
    %368 = vmatpush1.msra.mxu0 %v293
    %369 = vmatprep.subr.mxu0 0.0
    %370 = vmatpush1.msra.mxu0 %v294
    %371 = vmatprep.subr.mxu0 0.0
    %372 = vmatpush1.msra.mxu0 %v295
    %373 = vmatprep.subr.mxu0 0.0
    %374 = vmatpush1.msra.mxu0 %v296
    %375 = vmatprep.subr.mxu0 0.0
    %376 = vmatpush1.msra.mxu0 %v297
    %377 = vmatprep.subr.mxu0 0.0
    %378 = vmatpush1.msra.mxu0 %v298
    %379 = vmatprep.subr.mxu0 0.0
    %380 = vmatpush1.msra.mxu0 %v299
    %381 = vmatprep.subr.mxu0 0.0
    %382 = vmatpush1.msra.mxu0 %v300
    %383 = vmatprep.subr.mxu0 0.0
    %384 = vmatpush1.msra.mxu0 %v301
    %385 = vmatprep.subr.mxu0 0.0
    %386 = vmatpush1.msra.mxu0 %v302
    %387 = vmatprep.subr.mxu0 0.0
    %388 = vmatpush1.msra.mxu0 %v303
    %389 = vmatprep.subr.mxu0 0.0
    %390 = vmatpush1.msra.mxu0 %v304
    %391 = vmatprep.subr.mxu0 0.0
    %392 = vmatpush1.msra.mxu0 %v305
    %393 = vmatprep.subr.mxu0 0.0
    %394 = vmatpush1.msra.mxu0 %v306
    %395 = vmatprep.subr.mxu0 0.0
    %396 = vmatpush1.msra.mxu0 %v307
    %397 = vmatprep.subr.mxu0 0.0
    %398 = vmatpush1.msra.mxu0 %v308
    %399 = vmatprep.subr.mxu0 0.0
    %400 = vmatpush1.msra.mxu0 %v309
    %401 = vmatprep.subr.mxu0 0.0
    %402 = vmatpush1.msra.mxu0 %v310
    %403 = vmatprep.subr.mxu0 0.0
    %404 = vmatpush1.msra.mxu0 %v311
    %405 = vmatprep.subr.mxu0 0.0
    %406 = vmatpush1.msra.mxu0 %v312
    %407 = vmatprep.subr.mxu0 0.0
    %408 = vmatpush1.msra.mxu0 %v313
    %409 = vmatprep.subr.mxu0 0.0
    %410 = vmatpush1.msra.mxu0 %v314
    %411 = vmatprep.subr.mxu0 0.0
    %412 = vmatpush1.msra.mxu0 %v315
    %413 = vmatprep.subr.mxu0 0.0
    %414 = vmatpush1.msra.mxu0 %v316
    %415 = vmatprep.subr.mxu0 0.0
    %416 = vmatpush1.msra.mxu0 %v317
    %417 = vmatprep.subr.mxu0 0.0
    %418 = vmatpush1.msra.mxu0 %v318
    %419 = vmatprep.subr.mxu0 0.0
    %420 = vmatpush1.msra.mxu0 %v319
    %421 = vmatprep.subr.mxu0 0.0
    %422 = vmatpush1.msra.mxu0 %v320
    %423 = vmatprep.subr.mxu0 0.0
    %424 = vmatpush1.msra.mxu0 %v321
    %425 = vmatprep.mubr.f32.mxu0 %v359
    %426 = vmatmul.mubr.f32.gmra.mrb[0].mxu0 %v39
    %v427 = vpop.f32.mrb[0].mxu0
    %v428 = vadd.f32 0.0, %v427
    %v429 = vpop.f32.mrb[0].mxu0
    %430 = vdwg.mxu0
    %431 = vmatprep.subr.mxu0 0.0
    %432 = vmatpush1.msra.mxu0 %v322
    %433 = vmatprep.subr.mxu0 0.0
    %434 = vmatpush1.msra.mxu0 %v323
    %435 = vmatprep.subr.mxu0 0.0
    %436 = vmatpush1.msra.mxu0 %v324
    %437 = vmatprep.subr.mxu0 0.0
    %438 = vmatpush1.msra.mxu0 %v325
    %439 = vmatprep.subr.mxu0 0.0
    %440 = vmatpush1.msra.mxu0 %v326
    %441 = vmatprep.subr.mxu0 0.0
    %442 = vmatpush1.msra.mxu0 %v327
    %443 = vmatprep.subr.mxu0 0.0
    %444 = vmatpush1.msra.mxu0 %v328
    %445 = vmatprep.subr.mxu0 0.0
    %446 = vmatpush1.msra.mxu0 %v329
    %447 = vmatprep.subr.mxu0 0.0
    %448 = vmatpush1.msra.mxu0 %v330
    %449 = vmatprep.subr.mxu0 0.0
    %450 = vmatpush1.msra.mxu0 %v331
    %451 = vmatprep.subr.mxu0 0.0
    %452 = vmatpush1.msra.mxu0 %v332
    %453 = vmatprep.subr.mxu0 0.0
    %454 = vmatpush1.msra.mxu0 %v333
    %455 = vmatprep.subr.mxu0 0.0
    %456 = vmatpush1.msra.mxu0 %v334
    %457 = vmatprep.subr.mxu0 0.0
    %458 = vmatpush1.msra.mxu0 %v335
    %459 = vmatprep.subr.mxu0 0.0
    %460 = vmatpush1.msra.mxu0 %v336
    %461 = vmatprep.subr.mxu0 0.0
    %462 = vmatpush1.msra.mxu0 %v337
    %463 = vmatprep.subr.mxu0 0.0
    %464 = vmatpush1.msra.mxu0 0.0
    %465 = vmatprep.subr.mxu0 0.0
    %466 = vmatpush1.msra.mxu0 0.0
    %467 = vmatprep.subr.mxu0 0.0
    %468 = vmatpush1.msra.mxu0 0.0
    %469 = vmatprep.subr.mxu0 0.0
    %470 = vmatpush1.msra.mxu0 0.0
    %471 = vmatprep.subr.mxu0 0.0
    %472 = vmatpush1.msra.mxu0 0.0
    %473 = vmatprep.subr.mxu0 0.0
    %474 = vmatpush1.msra.mxu0 0.0
    %475 = vmatprep.subr.mxu0 0.0
    %476 = vmatpush1.msra.mxu0 0.0
    %477 = vmatprep.subr.mxu0 0.0
    %478 = vmatpush1.msra.mxu0 0.0
    %479 = vmatprep.subr.mxu0 0.0
    %480 = vmatpush1.msra.mxu0 0.0
    %481 = vmatprep.subr.mxu0 0.0
    %482 = vmatpush1.msra.mxu0 0.0
    %483 = vmatprep.subr.mxu0 0.0
    %484 = vmatpush1.msra.mxu0 0.0
    %485 = vmatprep.subr.mxu0 0.0
    %486 = vmatpush1.msra.mxu0 0.0
    %487 = vmatprep.subr.mxu0 0.0
    %488 = vmatpush1.msra.mxu0 0.0
    %489 = vmatprep.subr.mxu0 0.0
    %490 = vmatpush1.msra.mxu0 0.0
    %491 = vmatprep.subr.mxu0 0.0
    %492 = vmatpush1.msra.mxu0 0.0
    %493 = vmatprep.subr.mxu0 0.0
    %494 = vmatpush1.msra.mxu0 0.0
    %495 = vmatprep.mubr.f32.mxu0 0.0
    %496 = vmatmul.mubr.f32.gmra.mrb[0].mxu0 %v40
    %v497 = vpop.f32.mrb[0].mxu0
    %v498 = vadd.f32 %v428, %v497
    %v499 = vpop.f32.mrb[0].mxu0
    %500 = vdwg.mxu0
    %v501 = vmul.f32 %v498, 0.020833334
    %vm502 = vcmask 64512
    %v504 = vsel %vm502, %v501, 0
    %506 = vmatprep.subr.mxu0 %v356
    %507 = vmatpush1.msra.mxu0 %v355
    %508 = vmatprep.subr.mxu0 0.0
    %509 = vmatpush1.msra.mxu0 0.0
    %510 = vmatprep.subr.mxu0 0.0
    %511 = vmatpush1.msra.mxu0 0.0
    %512 = vmatprep.subr.mxu0 0.0
    %513 = vmatpush1.msra.mxu0 0.0
    %514 = vmatprep.subr.mxu0 0.0
    %515 = vmatpush1.msra.mxu0 0.0
    %516 = vmatprep.subr.mxu0 0.0
    %517 = vmatpush1.msra.mxu0 0.0
    %518 = vmatprep.subr.mxu0 0.0
    %519 = vmatpush1.msra.mxu0 0.0
    %520 = vmatprep.subr.mxu0 0.0
    %521 = vmatpush1.msra.mxu0 0.0
    %522 = vmatprep.subr.mxu0 0.0
    %523 = vmatpush1.msra.mxu0 0.0
    %524 = vmatprep.subr.mxu0 0.0
    %525 = vmatpush1.msra.mxu0 0.0
    %526 = vmatprep.subr.mxu0 0.0
    %527 = vmatpush1.msra.mxu0 0.0
    %528 = vmatprep.subr.mxu0 0.0
    %529 = vmatpush1.msra.mxu0 0.0
    %530 = vmatprep.subr.mxu0 0.0
    %531 = vmatpush1.msra.mxu0 0.0
    %532 = vmatprep.subr.mxu0 0.0
    %533 = vmatpush1.msra.mxu0 0.0
    %534 = vmatprep.subr.mxu0 0.0
    %535 = vmatpush1.msra.mxu0 0.0
    %536 = vmatprep.subr.mxu0 0.0
    %537 = vmatpush1.msra.mxu0 0.0
    %538 = vmatprep.subr.mxu0 0.0
    %539 = vmatpush1.msra.mxu0 0.0
    %540 = vmatprep.subr.mxu0 0.0
    %541 = vmatpush1.msra.mxu0 0.0
    %542 = vmatprep.subr.mxu0 0.0
    %543 = vmatpush1.msra.mxu0 0.0
    %544 = vmatprep.subr.mxu0 0.0
    %545 = vmatpush1.msra.mxu0 0.0
    %546 = vmatprep.subr.mxu0 0.0
    %547 = vmatpush1.msra.mxu0 0.0
    %548 = vmatprep.subr.mxu0 0.0
    %549 = vmatpush1.msra.mxu0 0.0
    %550 = vmatprep.subr.mxu0 0.0
    %551 = vmatpush1.msra.mxu0 0.0
    %552 = vmatprep.subr.mxu0 0.0
    %553 = vmatpush1.msra.mxu0 0.0
    %554 = vmatprep.subr.mxu0 0.0
    %555 = vmatpush1.msra.mxu0 0.0
    %556 = vmatprep.subr.mxu0 0.0
    %557 = vmatpush1.msra.mxu0 0.0
    %558 = vmatprep.subr.mxu0 0.0
    %559 = vmatpush1.msra.mxu0 0.0
    %560 = vmatprep.subr.mxu0 0.0
    %561 = vmatpush1.msra.mxu0 0.0
    %562 = vmatprep.subr.mxu0 0.0
    %563 = vmatpush1.msra.mxu0 0.0
    %564 = vmatprep.subr.mxu0 0.0
    %565 = vmatpush1.msra.mxu0 0.0
    %566 = vmatprep.subr.mxu0 0.0
    %567 = vmatpush1.msra.mxu0 0.0
    %568 = vmatprep.subr.mxu0 0.0
    %569 = vmatpush1.msra.mxu0 0.0
    %570 = vmatprep.mubr.f32.mxu0 0.0
    %571 = vmatmul.mubr.f32.gmra.mrb[0].mxu0 %v504
    %v572 = vpop.f32.mrb[0].mxu0
    %v573 = vadd.f32 0.0, %v572
    %v574 = vpop.f32.mrb[0].mxu0
    %v575 = vadd.f32 0.0, %v574
    %576 = vdwg.mxu0
    %577 = vmatprep.subr.mxu0 0.0
    %578 = vmatpush1.msra.mxu0 %v357
    %579 = vmatprep.subr.mxu0 0.0
    %580 = vmatpush1.msra.mxu0 0.0
    %581 = vmatprep.subr.mxu0 0.0
    %582 = vmatpush1.msra.mxu0 0.0
    %583 = vmatprep.subr.mxu0 0.0
    %584 = vmatpush1.msra.mxu0 0.0
    %585 = vmatprep.subr.mxu0 0.0
    %586 = vmatpush1.msra.mxu0 0.0
    %587 = vmatprep.subr.mxu0 0.0
    %588 = vmatpush1.msra.mxu0 0.0
    %589 = vmatprep.subr.mxu0 0.0
    %590 = vmatpush1.msra.mxu0 0.0
    %591 = vmatprep.subr.mxu0 0.0
    %592 = vmatpush1.msra.mxu0 0.0
    %593 = vmatprep.subr.mxu0 0.0
    %594 = vmatpush1.msra.mxu0 0.0
    %595 = vmatprep.subr.mxu0 0.0
    %596 = vmatpush1.msra.mxu0 0.0
    %597 = vmatprep.subr.mxu0 0.0
    %598 = vmatpush1.msra.mxu0 0.0
    %599 = vmatprep.subr.mxu0 0.0
    %600 = vmatpush1.msra.mxu0 0.0
    %601 = vmatprep.subr.mxu0 0.0
    %602 = vmatpush1.msra.mxu0 0.0
    %603 = vmatprep.subr.mxu0 0.0
    %604 = vmatpush1.msra.mxu0 0.0
    %605 = vmatprep.subr.mxu0 0.0
    %606 = vmatpush1.msra.mxu0 0.0
    %607 = vmatprep.subr.mxu0 0.0
    %608 = vmatpush1.msra.mxu0 0.0
    %609 = vmatprep.subr.mxu0 0.0
    %610 = vmatpush1.msra.mxu0 0.0
    %611 = vmatprep.subr.mxu0 0.0
    %612 = vmatpush1.msra.mxu0 0.0
    %613 = vmatprep.subr.mxu0 0.0
    %614 = vmatpush1.msra.mxu0 0.0
    %615 = vmatprep.subr.mxu0 0.0
    %616 = vmatpush1.msra.mxu0 0.0
    %617 = vmatprep.subr.mxu0 0.0
    %618 = vmatpush1.msra.mxu0 0.0
    %619 = vmatprep.subr.mxu0 0.0
    %620 = vmatpush1.msra.mxu0 0.0
    %621 = vmatprep.subr.mxu0 0.0
    %622 = vmatpush1.msra.mxu0 0.0
    %623 = vmatprep.subr.mxu0 0.0
    %624 = vmatpush1.msra.mxu0 0.0
    %625 = vmatprep.subr.mxu0 0.0
    %626 = vmatpush1.msra.mxu0 0.0
    %627 = vmatprep.subr.mxu0 0.0
    %628 = vmatpush1.msra.mxu0 0.0
    %629 = vmatprep.subr.mxu0 0.0
    %630 = vmatpush1.msra.mxu0 0.0
    %631 = vmatprep.subr.mxu0 0.0
    %632 = vmatpush1.msra.mxu0 0.0
    %633 = vmatprep.subr.mxu0 0.0
    %634 = vmatpush1.msra.mxu0 0.0
    %635 = vmatprep.subr.mxu0 0.0
    %636 = vmatpush1.msra.mxu0 0.0
    %637 = vmatprep.subr.mxu0 0.0
    %638 = vmatpush1.msra.mxu0 0.0
    %639 = vmatprep.subr.mxu0 0.0
    %640 = vmatpush1.msra.mxu0 0.0
    %641 = vmatprep.mubr.f32.mxu0 0.0
    %642 = vmatmul.mubr.f32.gmra.mrb[0].mxu0 %v504
    %v643 = vpop.f32.mrb[0].mxu0
    %v644 = vadd.f32 0.0, %v643
    %v645 = vpop.f32.mrb[0].mxu0
    %646 = vdwg.mxu0
    %v649 = vcombine.low %v573, %v575
    %v651 = vsub.f32 %v39, %v649
    %v652 = vsub.f32 %v40, %v644
    %v653 = vmul.f32 %v651, %v651
    %v654 = vmul.f32 %v652, %v652
    %v656 = vcombine.high %v653, %v653
    %658 = vmatprep.subr.mxu0 0.0
    %659 = vmatpush1.msra.mxu0 %v290
    %660 = vmatprep.subr.mxu0 0.0
    %661 = vmatpush1.msra.mxu0 %v291
    %662 = vmatprep.subr.mxu0 0.0
    %663 = vmatpush1.msra.mxu0 %v292
    %664 = vmatprep.subr.mxu0 0.0
    %665 = vmatpush1.msra.mxu0 %v293
    %666 = vmatprep.subr.mxu0 0.0
    %667 = vmatpush1.msra.mxu0 %v294
    %668 = vmatprep.subr.mxu0 0.0
    %669 = vmatpush1.msra.mxu0 %v295
    %670 = vmatprep.subr.mxu0 0.0
    %671 = vmatpush1.msra.mxu0 %v296
    %672 = vmatprep.subr.mxu0 0.0
    %673 = vmatpush1.msra.mxu0 %v297
    %674 = vmatprep.subr.mxu0 0.0
    %675 = vmatpush1.msra.mxu0 %v298
    %676 = vmatprep.subr.mxu0 0.0
    %677 = vmatpush1.msra.mxu0 %v299
    %678 = vmatprep.subr.mxu0 0.0
    %679 = vmatpush1.msra.mxu0 %v300
    %680 = vmatprep.subr.mxu0 0.0
    %681 = vmatpush1.msra.mxu0 %v301
    %682 = vmatprep.subr.mxu0 0.0
    %683 = vmatpush1.msra.mxu0 %v302
    %684 = vmatprep.subr.mxu0 0.0
    %685 = vmatpush1.msra.mxu0 %v303
    %686 = vmatprep.subr.mxu0 0.0
    %687 = vmatpush1.msra.mxu0 %v304
    %688 = vmatprep.subr.mxu0 0.0
    %689 = vmatpush1.msra.mxu0 %v305
    %690 = vmatprep.subr.mxu0 0.0
    %691 = vmatpush1.msra.mxu0 %v306
    %692 = vmatprep.subr.mxu0 0.0
    %693 = vmatpush1.msra.mxu0 %v307
    %694 = vmatprep.subr.mxu0 0.0
    %695 = vmatpush1.msra.mxu0 %v308
    %696 = vmatprep.subr.mxu0 0.0
    %697 = vmatpush1.msra.mxu0 %v309
    %698 = vmatprep.subr.mxu0 0.0
    %699 = vmatpush1.msra.mxu0 %v310
    %700 = vmatprep.subr.mxu0 0.0
    %701 = vmatpush1.msra.mxu0 %v311
    %702 = vmatprep.subr.mxu0 0.0
    %703 = vmatpush1.msra.mxu0 %v312
    %704 = vmatprep.subr.mxu0 0.0
    %705 = vmatpush1.msra.mxu0 %v313
    %706 = vmatprep.subr.mxu0 0.0
    %707 = vmatpush1.msra.mxu0 %v314
    %708 = vmatprep.subr.mxu0 0.0
    %709 = vmatpush1.msra.mxu0 %v315
    %710 = vmatprep.subr.mxu0 0.0
    %711 = vmatpush1.msra.mxu0 %v316
    %712 = vmatprep.subr.mxu0 0.0
    %713 = vmatpush1.msra.mxu0 %v317
    %714 = vmatprep.subr.mxu0 0.0
    %715 = vmatpush1.msra.mxu0 %v318
    %716 = vmatprep.subr.mxu0 0.0
    %717 = vmatpush1.msra.mxu0 %v319
    %718 = vmatprep.subr.mxu0 0.0
    %719 = vmatpush1.msra.mxu0 %v320
    %720 = vmatprep.subr.mxu0 0.0
    %721 = vmatpush1.msra.mxu0 %v321
    %722 = vmatprep.mubr.f32.mxu0 %v656
    %723 = vmatmul.mubr.f32.gmra.mrb[0].mxu0 %v653
    %v724 = vpop.f32.mrb[0].mxu0
    %v725 = vadd.f32 0.0, %v724
    %v726 = vpop.f32.mrb[0].mxu0
    %727 = vdwg.mxu0
    %728 = vmatprep.subr.mxu0 0.0
    %729 = vmatpush1.msra.mxu0 %v322
    %730 = vmatprep.subr.mxu0 0.0
    %731 = vmatpush1.msra.mxu0 %v323
    %732 = vmatprep.subr.mxu0 0.0
    %733 = vmatpush1.msra.mxu0 %v324
    %734 = vmatprep.subr.mxu0 0.0
    %735 = vmatpush1.msra.mxu0 %v325
    %736 = vmatprep.subr.mxu0 0.0
    %737 = vmatpush1.msra.mxu0 %v326
    %738 = vmatprep.subr.mxu0 0.0
    %739 = vmatpush1.msra.mxu0 %v327
    %740 = vmatprep.subr.mxu0 0.0
    %741 = vmatpush1.msra.mxu0 %v328
    %742 = vmatprep.subr.mxu0 0.0
    %743 = vmatpush1.msra.mxu0 %v329
    %744 = vmatprep.subr.mxu0 0.0
    %745 = vmatpush1.msra.mxu0 %v330
    %746 = vmatprep.subr.mxu0 0.0
    %747 = vmatpush1.msra.mxu0 %v331
    %748 = vmatprep.subr.mxu0 0.0
    %749 = vmatpush1.msra.mxu0 %v332
    %750 = vmatprep.subr.mxu0 0.0
    %751 = vmatpush1.msra.mxu0 %v333
    %752 = vmatprep.subr.mxu0 0.0
    %753 = vmatpush1.msra.mxu0 %v334
    %754 = vmatprep.subr.mxu0 0.0
    %755 = vmatpush1.msra.mxu0 %v335
    %756 = vmatprep.subr.mxu0 0.0
    %757 = vmatpush1.msra.mxu0 %v336
    %758 = vmatprep.subr.mxu0 0.0
    %759 = vmatpush1.msra.mxu0 %v337
    %760 = vmatprep.subr.mxu0 0.0
    %761 = vmatpush1.msra.mxu0 0.0
    %762 = vmatprep.subr.mxu0 0.0
    %763 = vmatpush1.msra.mxu0 0.0
    %764 = vmatprep.subr.mxu0 0.0
    %765 = vmatpush1.msra.mxu0 0.0
    %766 = vmatprep.subr.mxu0 0.0
    %767 = vmatpush1.msra.mxu0 0.0
    %768 = vmatprep.subr.mxu0 0.0
    %769 = vmatpush1.msra.mxu0 0.0
    %770 = vmatprep.subr.mxu0 0.0
    %771 = vmatpush1.msra.mxu0 0.0
    %772 = vmatprep.subr.mxu0 0.0
    %773 = vmatpush1.msra.mxu0 0.0
    %774 = vmatprep.subr.mxu0 0.0
    %775 = vmatpush1.msra.mxu0 0.0
    %776 = vmatprep.subr.mxu0 0.0
    %777 = vmatpush1.msra.mxu0 0.0
    %778 = vmatprep.subr.mxu0 0.0
    %779 = vmatpush1.msra.mxu0 0.0
    %780 = vmatprep.subr.mxu0 0.0
    %781 = vmatpush1.msra.mxu0 0.0
    %782 = vmatprep.subr.mxu0 0.0
    %783 = vmatpush1.msra.mxu0 0.0
    %784 = vmatprep.subr.mxu0 0.0
    %785 = vmatpush1.msra.mxu0 0.0
    %786 = vmatprep.subr.mxu0 0.0
    %787 = vmatpush1.msra.mxu0 0.0
    %788 = vmatprep.subr.mxu0 0.0
    %789 = vmatpush1.msra.mxu0 0.0
    %790 = vmatprep.subr.mxu0 0.0
    %791 = vmatpush1.msra.mxu0 0.0
    %792 = vmatprep.mubr.f32.mxu0 0.0
    %793 = vmatmul.mubr.f32.gmra.mrb[0].mxu0 %v654
    %v794 = vpop.f32.mrb[0].mxu0
    %v795 = vadd.f32 %v725, %v794
    %v796 = vpop.f32.mrb[0].mxu0
    %797 = vdwg.mxu0
    %v798 = vmul.f32 %v795, 0.021276595
    %v799 = vadd.f32 %v798, 1e-06
    %v800 = vrsqrt.pop %v799
    %v802 = vsel %vm502, %v800, 0
    %804 = vmatprep.subr.mxu0 %v356
    %805 = vmatpush1.msra.mxu0 %v355
    %806 = vmatprep.subr.mxu0 0.0
    %807 = vmatpush1.msra.mxu0 0.0
    %808 = vmatprep.subr.mxu0 0.0
    %809 = vmatpush1.msra.mxu0 0.0
    %810 = vmatprep.subr.mxu0 0.0
    %811 = vmatpush1.msra.mxu0 0.0
    %812 = vmatprep.subr.mxu0 0.0
    %813 = vmatpush1.msra.mxu0 0.0
    %814 = vmatprep.subr.mxu0 0.0
    %815 = vmatpush1.msra.mxu0 0.0
    %816 = vmatprep.subr.mxu0 0.0
    %817 = vmatpush1.msra.mxu0 0.0
    %818 = vmatprep.subr.mxu0 0.0
    %819 = vmatpush1.msra.mxu0 0.0
    %820 = vmatprep.subr.mxu0 0.0
    %821 = vmatpush1.msra.mxu0 0.0
    %822 = vmatprep.subr.mxu0 0.0
    %823 = vmatpush1.msra.mxu0 0.0
    %824 = vmatprep.subr.mxu0 0.0
    %825 = vmatpush1.msra.mxu0 0.0
    %826 = vmatprep.subr.mxu0 0.0
    %827 = vmatpush1.msra.mxu0 0.0
    %828 = vmatprep.subr.mxu0 0.0
    %829 = vmatpush1.msra.mxu0 0.0
    %830 = vmatprep.subr.mxu0 0.0
    %831 = vmatpush1.msra.mxu0 0.0
    %832 = vmatprep.subr.mxu0 0.0
    %833 = vmatpush1.msra.mxu0 0.0
    %834 = vmatprep.subr.mxu0 0.0
    %835 = vmatpush1.msra.mxu0 0.0
    %836 = vmatprep.subr.mxu0 0.0
    %837 = vmatpush1.msra.mxu0 0.0
    %838 = vmatprep.subr.mxu0 0.0
    %839 = vmatpush1.msra.mxu0 0.0
    %840 = vmatprep.subr.mxu0 0.0
    %841 = vmatpush1.msra.mxu0 0.0
    %842 = vmatprep.subr.mxu0 0.0
    %843 = vmatpush1.msra.mxu0 0.0
    %844 = vmatprep.subr.mxu0 0.0
    %845 = vmatpush1.msra.mxu0 0.0
    %846 = vmatprep.subr.mxu0 0.0
    %847 = vmatpush1.msra.mxu0 0.0
    %848 = vmatprep.subr.mxu0 0.0
    %849 = vmatpush1.msra.mxu0 0.0
    %850 = vmatprep.subr.mxu0 0.0
    %851 = vmatpush1.msra.mxu0 0.0
    %852 = vmatprep.subr.mxu0 0.0
    %853 = vmatpush1.msra.mxu0 0.0
    %854 = vmatprep.subr.mxu0 0.0
    %855 = vmatpush1.msra.mxu0 0.0
    %856 = vmatprep.subr.mxu0 0.0
    %857 = vmatpush1.msra.mxu0 0.0
    %858 = vmatprep.subr.mxu0 0.0
    %859 = vmatpush1.msra.mxu0 0.0
    %860 = vmatprep.subr.mxu0 0.0
    %861 = vmatpush1.msra.mxu0 0.0
    %862 = vmatprep.subr.mxu0 0.0
    %863 = vmatpush1.msra.mxu0 0.0
    %864 = vmatprep.subr.mxu0 0.0
    %865 = vmatpush1.msra.mxu0 0.0
    %866 = vmatprep.subr.mxu0 0.0
    %867 = vmatpush1.msra.mxu0 0.0
    %868 = vmatprep.mubr.f32.mxu0 0.0
    %869 = vmatmul.mubr.f32.gmra.mrb[0].mxu0 %v802
    %v870 = vpop.f32.mrb[0].mxu0
    %v871 = vadd.f32 0.0, %v870
    %v872 = vpop.f32.mrb[0].mxu0
    %v873 = vadd.f32 0.0, %v872
    %874 = vdwg.mxu0
    %875 = vmatprep.subr.mxu0 0.0
    %876 = vmatpush1.msra.mxu0 %v357
    %877 = vmatprep.subr.mxu0 0.0
    %878 = vmatpush1.msra.mxu0 0.0
    %879 = vmatprep.subr.mxu0 0.0
    %880 = vmatpush1.msra.mxu0 0.0
    %881 = vmatprep.subr.mxu0 0.0
    %882 = vmatpush1.msra.mxu0 0.0
    %883 = vmatprep.subr.mxu0 0.0
    %884 = vmatpush1.msra.mxu0 0.0
    %885 = vmatprep.subr.mxu0 0.0
    %886 = vmatpush1.msra.mxu0 0.0
    %887 = vmatprep.subr.mxu0 0.0
    %888 = vmatpush1.msra.mxu0 0.0
    %889 = vmatprep.subr.mxu0 0.0
    %890 = vmatpush1.msra.mxu0 0.0
    %891 = vmatprep.subr.mxu0 0.0
    %892 = vmatpush1.msra.mxu0 0.0
    %893 = vmatprep.subr.mxu0 0.0
    %894 = vmatpush1.msra.mxu0 0.0
    %895 = vmatprep.subr.mxu0 0.0
    %896 = vmatpush1.msra.mxu0 0.0
    %897 = vmatprep.subr.mxu0 0.0
    %898 = vmatpush1.msra.mxu0 0.0
    %899 = vmatprep.subr.mxu0 0.0
    %900 = vmatpush1.msra.mxu0 0.0
    %901 = vmatprep.subr.mxu0 0.0
    %902 = vmatpush1.msra.mxu0 0.0
    %903 = vmatprep.subr.mxu0 0.0
    %904 = vmatpush1.msra.mxu0 0.0
    %905 = vmatprep.subr.mxu0 0.0
    %906 = vmatpush1.msra.mxu0 0.0
    %907 = vmatprep.subr.mxu0 0.0
    %908 = vmatpush1.msra.mxu0 0.0
    %909 = vmatprep.subr.mxu0 0.0
    %910 = vmatpush1.msra.mxu0 0.0
    %911 = vmatprep.subr.mxu0 0.0
    %912 = vmatpush1.msra.mxu0 0.0
    %913 = vmatprep.subr.mxu0 0.0
    %914 = vmatpush1.msra.mxu0 0.0
    %915 = vmatprep.subr.mxu0 0.0
    %916 = vmatpush1.msra.mxu0 0.0
    %917 = vmatprep.subr.mxu0 0.0
    %918 = vmatpush1.msra.mxu0 0.0
    %919 = vmatprep.subr.mxu0 0.0
    %920 = vmatpush1.msra.mxu0 0.0
    %921 = vmatprep.subr.mxu0 0.0
    %922 = vmatpush1.msra.mxu0 0.0
    %923 = vmatprep.subr.mxu0 0.0
    %924 = vmatpush1.msra.mxu0 0.0
    %925 = vmatprep.subr.mxu0 0.0
    %926 = vmatpush1.msra.mxu0 0.0
    %927 = vmatprep.subr.mxu0 0.0
    %928 = vmatpush1.msra.mxu0 0.0
    %929 = vmatprep.subr.mxu0 0.0
    %930 = vmatpush1.msra.mxu0 0.0
    %931 = vmatprep.subr.mxu0 0.0
    %932 = vmatpush1.msra.mxu0 0.0
    %933 = vmatprep.subr.mxu0 0.0
    %934 = vmatpush1.msra.mxu0 0.0
    %935 = vmatprep.subr.mxu0 0.0
    %936 = vmatpush1.msra.mxu0 0.0
    %937 = vmatprep.subr.mxu0 0.0
    %938 = vmatpush1.msra.mxu0 0.0
    %939 = vmatprep.mubr.f32.mxu0 0.0
    %940 = vmatmul.mubr.f32.gmra.mrb[0].mxu0 %v802
    %v941 = vpop.f32.mrb[0].mxu0
    %v942 = vadd.f32 0.0, %v941
    %v943 = vpop.f32.mrb[0].mxu0
    %944 = vdwg.mxu0
    %v947 = vcombine.low %v871, %v873
    %v949 = vmul.f32 %v651, %v947
    %v950 = vmul.f32 %v652, %v942
    %v951 = vsub.f32 %v41, %v949
    %v952 = vsub.f32 %v42, %v950
    %v953 = vmul.f32 %v951, %v951
    %v954 = vmul.f32 %v952, %v952
    %v956 = vcombine.high %v953, %v953
    %958 = vmatprep.subr.mxu0 0.0
    %959 = vmatpush1.msra.mxu0 %v290
    %960 = vmatprep.subr.mxu0 0.0
    %961 = vmatpush1.msra.mxu0 %v291
    %962 = vmatprep.subr.mxu0 0.0
    %963 = vmatpush1.msra.mxu0 %v292
    %964 = vmatprep.subr.mxu0 0.0
    %965 = vmatpush1.msra.mxu0 %v293
    %966 = vmatprep.subr.mxu0 0.0
    %967 = vmatpush1.msra.mxu0 %v294
    %968 = vmatprep.subr.mxu0 0.0
    %969 = vmatpush1.msra.mxu0 %v295
    %970 = vmatprep.subr.mxu0 0.0
    %971 = vmatpush1.msra.mxu0 %v296
    %972 = vmatprep.subr.mxu0 0.0
    %973 = vmatpush1.msra.mxu0 %v297
    %974 = vmatprep.subr.mxu0 0.0
    %975 = vmatpush1.msra.mxu0 %v298
    %976 = vmatprep.subr.mxu0 0.0
    %977 = vmatpush1.msra.mxu0 %v299
    %978 = vmatprep.subr.mxu0 0.0
    %979 = vmatpush1.msra.mxu0 %v300
    %980 = vmatprep.subr.mxu0 0.0
    %981 = vmatpush1.msra.mxu0 %v301
    %982 = vmatprep.subr.mxu0 0.0
    %983 = vmatpush1.msra.mxu0 %v302
    %984 = vmatprep.subr.mxu0 0.0
    %985 = vmatpush1.msra.mxu0 %v303
    %986 = vmatprep.subr.mxu0 0.0
    %987 = vmatpush1.msra.mxu0 %v304
    %988 = vmatprep.subr.mxu0 0.0
    %989 = vmatpush1.msra.mxu0 %v305
    %990 = vmatprep.subr.mxu0 0.0
    %991 = vmatpush1.msra.mxu0 %v306
    %992 = vmatprep.subr.mxu0 0.0
    %993 = vmatpush1.msra.mxu0 %v307
    %994 = vmatprep.subr.mxu0 0.0
    %995 = vmatpush1.msra.mxu0 %v308
    %996 = vmatprep.subr.mxu0 0.0
    %997 = vmatpush1.msra.mxu0 %v309
    %998 = vmatprep.subr.mxu0 0.0
    %999 = vmatpush1.msra.mxu0 %v310
    %1000 = vmatprep.subr.mxu0 0.0
    %1001 = vmatpush1.msra.mxu0 %v311
    %1002 = vmatprep.subr.mxu0 0.0
    %1003 = vmatpush1.msra.mxu0 %v312
    %1004 = vmatprep.subr.mxu0 0.0
    %1005 = vmatpush1.msra.mxu0 %v313
    %1006 = vmatprep.subr.mxu0 0.0
    %1007 = vmatpush1.msra.mxu0 %v314
    %1008 = vmatprep.subr.mxu0 0.0
    %1009 = vmatpush1.msra.mxu0 %v315
    %1010 = vmatprep.subr.mxu0 0.0
    %1011 = vmatpush1.msra.mxu0 %v316
    %1012 = vmatprep.subr.mxu0 0.0
    %1013 = vmatpush1.msra.mxu0 %v317
    %1014 = vmatprep.subr.mxu0 0.0
    %1015 = vmatpush1.msra.mxu0 %v318
    %1016 = vmatprep.subr.mxu0 0.0
    %1017 = vmatpush1.msra.mxu0 %v319
    %1018 = vmatprep.subr.mxu0 0.0
    %1019 = vmatpush1.msra.mxu0 %v320
    %1020 = vmatprep.subr.mxu0 0.0
    %1021 = vmatpush1.msra.mxu0 %v321
    %1022 = vmatprep.mubr.f32.mxu0 %v956
    %1023 = vmatmul.mubr.f32.gmra.mrb[0].mxu0 %v953
    %v1024 = vpop.f32.mrb[0].mxu0
    %v1025 = vadd.f32 0.0, %v1024
    %v1026 = vpop.f32.mrb[0].mxu0
    %1027 = vdwg.mxu0
    %1028 = vmatprep.subr.mxu0 0.0
    %1029 = vmatpush1.msra.mxu0 %v322
    %1030 = vmatprep.subr.mxu0 0.0
    %1031 = vmatpush1.msra.mxu0 %v323
    %1032 = vmatprep.subr.mxu0 0.0
    %1033 = vmatpush1.msra.mxu0 %v324
    %1034 = vmatprep.subr.mxu0 0.0
    %1035 = vmatpush1.msra.mxu0 %v325
    %1036 = vmatprep.subr.mxu0 0.0
    %1037 = vmatpush1.msra.mxu0 %v326
    %1038 = vmatprep.subr.mxu0 0.0
    %1039 = vmatpush1.msra.mxu0 %v327
    %1040 = vmatprep.subr.mxu0 0.0
    %1041 = vmatpush1.msra.mxu0 %v328
    %1042 = vmatprep.subr.mxu0 0.0
    %1043 = vmatpush1.msra.mxu0 %v329
    %1044 = vmatprep.subr.mxu0 0.0
    %1045 = vmatpush1.msra.mxu0 %v330
    %1046 = vmatprep.subr.mxu0 0.0
    %1047 = vmatpush1.msra.mxu0 %v331
    %1048 = vmatprep.subr.mxu0 0.0
    %1049 = vmatpush1.msra.mxu0 %v332
    %1050 = vmatprep.subr.mxu0 0.0
    %1051 = vmatpush1.msra.mxu0 %v333
    %1052 = vmatprep.subr.mxu0 0.0
    %1053 = vmatpush1.msra.mxu0 %v334
    %1054 = vmatprep.subr.mxu0 0.0
    %1055 = vmatpush1.msra.mxu0 %v335
    %1056 = vmatprep.subr.mxu0 0.0
    %1057 = vmatpush1.msra.mxu0 %v336
    %1058 = vmatprep.subr.mxu0 0.0
    %1059 = vmatpush1.msra.mxu0 %v337
    %1060 = vmatprep.subr.mxu0 0.0
    %1061 = vmatpush1.msra.mxu0 0.0
    %1062 = vmatprep.subr.mxu0 0.0
    %1063 = vmatpush1.msra.mxu0 0.0
    %1064 = vmatprep.subr.mxu0 0.0
    %1065 = vmatpush1.msra.mxu0 0.0
    %1066 = vmatprep.subr.mxu0 0.0
    %1067 = vmatpush1.msra.mxu0 0.0
    %1068 = vmatprep.subr.mxu0 0.0
    %1069 = vmatpush1.msra.mxu0 0.0
    %1070 = vmatprep.subr.mxu0 0.0
    %1071 = vmatpush1.msra.mxu0 0.0
    %1072 = vmatprep.subr.mxu0 0.0
    %1073 = vmatpush1.msra.mxu0 0.0
    %1074 = vmatprep.subr.mxu0 0.0
    %1075 = vmatpush1.msra.mxu0 0.0
    %1076 = vmatprep.subr.mxu0 0.0
    %1077 = vmatpush1.msra.mxu0 0.0
    %1078 = vmatprep.subr.mxu0 0.0
    %1079 = vmatpush1.msra.mxu0 0.0
    %1080 = vmatprep.subr.mxu0 0.0
    %1081 = vmatpush1.msra.mxu0 0.0
    %1082 = vmatprep.subr.mxu0 0.0
    %1083 = vmatpush1.msra.mxu0 0.0
    %1084 = vmatprep.subr.mxu0 0.0
    %1085 = vmatpush1.msra.mxu0 0.0
    %1086 = vmatprep.subr.mxu0 0.0
    %1087 = vmatpush1.msra.mxu0 0.0
    %1088 = vmatprep.subr.mxu0 0.0
    %1089 = vmatpush1.msra.mxu0 0.0
    %1090 = vmatprep.subr.mxu0 0.0
    %1091 = vmatpush1.msra.mxu0 0.0
    %1092 = vmatprep.mubr.f32.mxu0 0.0
    %1093 = vmatmul.mubr.f32.gmra.mrb[0].mxu0 %v954
    %v1094 = vpop.f32.mrb[0].mxu0
    %v1095 = vadd.f32 %v1025, %v1094
    %v1096 = vpop.f32.mrb[0].mxu0
    %1097 = vdwg.mxu0
    %v1098 = vmul.f32 %v1095, 0.020833334
    %v1099 = vmul.f32 %v1098, %v43
    %vm1100 = vcmask 60416
    %v1101 = vsel %vm1100, %v1099, 0.0
    %1102 = vadd.xlane.f32.xlu0 %v1101
    %v1103 = vpop.xlane.xlu0 %1102
    %v1104 = vrot.slane %v1103, 4
    %v1105 = vadd.f32 %v1103, %v1104
    %v1106 = vrot.slane %v1105, 2
    %v1107 = vadd.f32 %v1105, %v1106
    %v1108 = vrot.slane %v1107, 1
    %v1109 = vadd.f32 %v1107, %v1108
    %s1110 = vtos %v1109
    %v1111 = vstv %s1110
    %1112 = vst [vmem:[#allocation7] sm:$0xff] %v1111
    // Predicated region
    $region22: #{tpu_custom_call.1} parent=1 // pred_check
      _
    $region23: #{tpu_custom_call.1} parent=1 // pred_check_branch
      %1114 = sbr.rel (0) target = $region25
    $region24: #{tpu_custom_call.1} parent=1 // pred_region
      %s1116 = ssub.s32 128, 128
      %1117 = vsyncadd [#allocation4], %s1116
      %s1119 = sshll.u32 [#allocation7], 4
      %s1120 = int_to_ptr.vmem [resolvable:$true] %s1119
      %1122 = dma.vmem_to_hbm [thread:$0]  %s1120, 128, %s3, [#allocation4]
    $region25: #{tpu_custom_call.1} parent=1 // pred_fallthru
      _
    // Predicated region
    $region26: #{tpu_custom_call.1} parent=1 // pred_check
      _
    $region27: #{tpu_custom_call.1} parent=1 // pred_check_branch
      %1124 = sbr.rel (0) target = $region29
    $region28: #{tpu_custom_call.1} parent=1 // pred_region
      %1125 = dma.done [#allocation4], 128
    $region29: #{tpu_custom_call.1} parent=1 // pred_fallthru
      _
    %1126 = vsyncpa [#allocation3], 1
    %1127 = vsyncpa [#allocation6], 1
    %1128 = vsyncpa [#allocation4], 1

</llo_original>
